<compile_context>
chip_gen: v7x
topology: tpu7x:2x2x1
jax: 0.10.0
libtpu: 0.0.40
codegen_flags: <defaults>
</compile_context>

<pallas_src>
import jax
import jax.numpy as jnp
from jax.experimental import pallas as pl
from jax.experimental.pallas import tpu as pltpu

# ------------------- small demo config -------------------
V = 16          # vocab_size == number of Linear(1, E) layers (== sequence dim 0)
E = 128         # embed_size (spec default 512); >=128 keeps output stores lane-dense
B = 2           # rows per position after .view(-1, V, E)
N = B * V       # rows fed to each Linear(1, E)
TV = 8          # positions (vocab entries) per grid step; sublane-aligned (multiple of 8)


# ------------------- fused kernel -------------------
def _flux_kernel(seq_ref, w_ref, b_ref, o_ref):
    # seq_ref: (TV, N)     per-(position, row) scalar  -> broadcasts along lanes (E)
    # w_ref  : (TV, E)     stacked Linear(1, E) weights -> broadcasts along sublanes (N)
    # b_ref  : (TV, E)     stacked biases
    # o_ref  : (TV, N, E)
    s = seq_ref[...][:, :, None]      # (TV, N, 1)
    w = w_ref[...][:, None, :]        # (TV, 1, E)
    b = b_ref[...][:, None, :]        # (TV, 1, E)
    o_ref[...] = s * w + b            # VPU broadcast FMA; no MXU for Linear(1, E)


def prepare_params(weights_torch_layout, biases):
    """One-time (init) parameter relayout, hoisted out of the per-call path.

    weights_torch_layout: (V, E, 1)  (PyTorch nn.Linear(1, E).weight layout)
    biases:               (V, E)
    Returns (w2, b2) in the fused (V, E) float32 layout the kernel consumes.
    """
    w2 = weights_torch_layout.reshape(V, E).astype(jnp.float32)
    b2 = biases.reshape(V, E).astype(jnp.float32)
    return w2, b2


@jax.jit
def flux_embedding(sequence, w2, b2):
    """sequence: (V, N, 1) or (V, N); w2, b2: (V, E) f32 (from prepare_params).

    Returns the stacked (V, N, E) result. The PyTorch per-position view is a single
    metadata-only reshape: stacked.reshape(V, N // V, V, E).
    """
    seq2 = sequence.reshape(V, N).astype(jnp.float32)   # metadata-only squeeze of the (.,1) axis
    stacked = pl.pallas_call(
        _flux_kernel,
        out_shape=jax.ShapeDtypeStruct((V, N, E), jnp.float32),
        grid=(V // TV,),
        in_specs=[
            pl.BlockSpec((TV, N), lambda v: (v, 0)),
            pl.BlockSpec((TV, E), lambda v: (v, 0)),
            pl.BlockSpec((TV, E), lambda v: (v, 0)),
        ],
        out_specs=pl.BlockSpec((TV, N, E), lambda v: (v, 0, 0)),
        compiler_params=pltpu.CompilerParams(
            dimension_semantics=("parallel",),          # positions independent -> 2 TCs on v7x
            vmem_limit_bytes=32 * 1024 * 1024,          # conservative for v7x's 64 MiB VMEM
        ),
    )(seq2, w2, b2)
    return stacked


def flux_embedding_as_list(stacked):
    """Match the PyTorch forward's list-of-(B, V, E) API with one metadata reshape."""
    out4 = stacked.reshape(V, -1, V, E)                 # (V, B, V, E), metadata only
    return list(out4)                                   # lazy unstack at the caller


# ------------------- pure-JAX reference (direct port of the PyTorch forward) -------------------
def reference_forward(sequence, weights, biases):
    outs = []
    for v in range(V):
        x = sequence[v]                                  # (N, 1)
        y = x @ weights[v].T + biases[v]                 # nn.Linear(1, E)
        outs.append(y.reshape(-1, V, E))                 # .view(-1, vocab_size, embed_size)
    return outs


if __name__ == "__main__":
    key = jax.random.PRNGKey(0)
    ks, kw, kb = jax.random.split(key, 3)
    sequence = jax.random.uniform(ks, (V, N, 1), jnp.float32, minval=-1.0, maxval=3.0)
    weights = 0.02 * jax.random.normal(kw, (V, E, 1), jnp.float32)   # PyTorch Linear weight layout
    biases = 0.02 * jax.random.normal(kb, (V, E), jnp.float32)

    # Init-time parameter prep (done once), then the fused forward.
    w2, b2 = prepare_params(weights, biases)
    stacked = jax.block_until_ready(flux_embedding(sequence, w2, b2))

    # Reference (list of V arrays, each (B, V, E)), stacked for a single comparison.
    refs = reference_forward(sequence, weights, biases)
    ref_stacked = jnp.stack([r.reshape(N, E) for r in refs], axis=0)  # (V, N, E)

    assert stacked.shape == (V, N, E), stacked.shape
    assert bool(jnp.all(jnp.isfinite(stacked)))
    assert bool(jnp.allclose(stacked, ref_stacked, rtol=1e-5, atol=1e-5))

    # PyTorch-API-shaped output (list of (B, V, E)) via one metadata reshape.
    outs = flux_embedding_as_list(stacked)
    assert len(outs) == V
    assert all(o.shape == (B, V, E) for o in outs)
    assert bool(jnp.allclose(outs[0], refs[0], rtol=1e-5, atol=1e-5))

    print("KERNEL_OK")
</pallas_src>

<mosaic_0001>
module attributes {stable_mosaic.version = 11 : i64} {
  func.func @_flux_kernel(%arg0: i32, %arg1: memref<8x32xf32, #tpu.memory_space<vmem>>, %arg2: memref<8x128xf32, #tpu.memory_space<vmem>>, %arg3: memref<8x128xf32, #tpu.memory_space<vmem>>, %arg4: memref<8x32x128xf32, #tpu.memory_space<vmem>>) attributes {dimension_semantics = [#tpu.dimension_semantics<parallel>], iteration_bounds = array<i64: 2>, scalar_prefetch = 0 : i64, scratch_operands = 0 : i64, tpu.core_type = #tpu.core_type<tc>, window_params = [{transform_indices = @transform_0, window_bounds = array<i64: 8, 32>}, {transform_indices = @transform_1, window_bounds = array<i64: 8, 128>}, {transform_indices = @transform_2, window_bounds = array<i64: 8, 128>}, {transform_indices = @transform_3, window_bounds = array<i64: 8, 32, 128>}]} {
    %c0 = arith.constant 0 : index
    %c0_0 = arith.constant 0 : index
    %0 = vector.load %arg1[%c0, %c0_0] : memref<8x32xf32, #tpu.memory_space<vmem>>, vector<8x32xf32>
    %1 = vector.shape_cast %0 : vector<8x32xf32> to vector<8x32x1xf32>
    %c0_1 = arith.constant 0 : index
    %c0_2 = arith.constant 0 : index
    %2 = vector.load %arg2[%c0_1, %c0_2] : memref<8x128xf32, #tpu.memory_space<vmem>>, vector<8x128xf32>
    %3 = vector.shape_cast %2 : vector<8x128xf32> to vector<8x1x128xf32>
    %c0_3 = arith.constant 0 : index
    %c0_4 = arith.constant 0 : index
    %4 = vector.load %arg3[%c0_3, %c0_4] : memref<8x128xf32, #tpu.memory_space<vmem>>, vector<8x128xf32>
    %5 = vector.shape_cast %4 : vector<8x128xf32> to vector<8x1x128xf32>
    %6 = vector.broadcast %1 : vector<8x32x1xf32> to vector<8x32x128xf32>
    %7 = vector.broadcast %3 : vector<8x1x128xf32> to vector<8x32x128xf32>
    %8 = arith.mulf %6, %7 : vector<8x32x128xf32>
    %9 = vector.broadcast %5 : vector<8x1x128xf32> to vector<8x32x128xf32>
    %10 = arith.addf %8, %9 : vector<8x32x128xf32>
    %c0_5 = arith.constant 0 : index
    %c0_6 = arith.constant 0 : index
    %c0_7 = arith.constant 0 : index
    %11 = vector.load %arg4[%c0_5, %c0_6, %c0_7] : memref<8x32x128xf32, #tpu.memory_space<vmem>>, vector<8x32x128xf32>
    tpu.vector_store %arg4[%c0_5, %c0_6, %c0_7], %10 {strides = array<i32>} : memref<8x32x128xf32, #tpu.memory_space<vmem>>, vector<8x32x128xf32>,
    return
  }
  func.func @transform_0(%arg0: i32) -> (i32, i32) {
    %c0_i32 = arith.constant 0 : i32
    %c0_i32_0 = arith.constant 0 : i32
    return %arg0, %c0_i32 : i32, i32
  }
  func.func @transform_1(%arg0: i32) -> (i32, i32) {
    %c0_i32 = arith.constant 0 : i32
    %c0_i32_0 = arith.constant 0 : i32
    return %arg0, %c0_i32 : i32, i32
  }
  func.func @transform_2(%arg0: i32) -> (i32, i32) {
    %c0_i32 = arith.constant 0 : i32
    %c0_i32_0 = arith.constant 0 : i32
    return %arg0, %c0_i32 : i32, i32
  }
  func.func @transform_3(%arg0: i32) -> (i32, i32, i32) {
    %c0_i32 = arith.constant 0 : i32
    %c0_i32_0 = arith.constant 0 : i32
    %c0_i32_1 = arith.constant 0 : i32
    return %arg0, %c0_i32, %c0_i32_0 : i32, i32, i32
  }
}

</mosaic_0001>

<llo_original>
// kernel: flux_embedding.1
$region0: #{flux_embedding.1}
  #allocation0 [shape = 'u32[]', space=smem, size = 0x4, offset = 0x4, fixed_abs, tag = 'smem constant byte address 0x4 - core index']
  #allocation1 [shape = 'u32[144,128]{1,0:T(1,128)}', space=vmem, size = 0x12000, scoped, tag = 'internal scratch']
  %s0 = inlined_call_operand.hbm [shape: f32[16,32], index: 0, kind: input, shape index: {}]
  %s1 = inlined_call_operand.hbm [shape: f32[16,128], index: 1, kind: input, shape index: {}]
  %s2 = inlined_call_operand.hbm [shape: f32[16,128], index: 2, kind: input, shape index: {}]
  %s3 = inlined_call_operand.hbm [shape: f32[16,32,128], index: 3, kind: output, shape index: {}]
  %s4 = sld [smem:[#allocation0]]
  $region57: #{flux_embedding.1} parent=0
    _
  %s6 = ssub.s32 1, %s4
  %s7 = scalar_select 0, %s6, %s4
  $region1: #{flux_embedding.1} parent=0
    #allocation2 [shape = 'u8[8192]{0}', space=vmem, size = 0x2000, scoped, tag = 'input window, operand 0']
    #allocation3 [shape = 's32[2]{0}', space=sflag, size = 0x8, scoped, tag = 'scoped memory for flux_embedding.1']
    #allocation4 [shape = 's32[2]{0}', space=sflag, size = 0x8, scoped, tag = 'scoped memory for flux_embedding.1']
    #allocation5 [shape = 'u8[8192]{0}', space=vmem, size = 0x2000, scoped, tag = 'input window, operand 1']
    #allocation6 [shape = 's32[2]{0}', space=sflag, size = 0x8, scoped, tag = 'scoped memory for flux_embedding.1']
    #allocation7 [shape = 'u8[8192]{0}', space=vmem, size = 0x2000, scoped, tag = 'input window, operand 2']
    #allocation8 [shape = 'u8[262144]{0}', space=vmem, size = 0x40000, scoped, tag = 'output window, operand 0']
    %8 = vsyncpa [#allocation3], 0
    %s9 = scalar_lea.sflag [#allocation3], 1
    %10 = vsyncpa %s9, 0
    %11 = vsyncpa [#allocation6], 0
    %s12 = scalar_lea.sflag [#allocation6], 1
    %13 = vsyncpa %s12, 0
    %14 = vsyncpa [#allocation4], 0
    %s15 = scalar_lea.sflag [#allocation4], 1
    %16 = vsyncpa %s15, 0
    loop: start=0, step=1, limit=4
    $region2: #{flux_embedding.1} parent=1 // loop_pre_header
      _
    $region3: #{flux_embedding.1} parent=1 // loop_header
      %s18 = sphi 0, %s22
      %p19 = scmp.ge.s32.totalorder %s18, 4
      %s28 = sphi 0, %s30
      %s31 = sphi 0, %s28
      %s32 = sphi 0, %s31
      %s48 = sphi 0, %s32
      %s54 = sphi 0, %s56
      %s57 = sphi 0, %s54
      %s58 = sphi 0, %s57
      %s74 = sphi 0, %s58
      %s80 = sphi 0, %s82
      %s83 = sphi 0, %s80
      %s84 = sphi 0, %s83
      %s100 = sphi 0, %s84
      %s106 = sphi 0, %s108
      %s109 = sphi 0, %s106
      %s110 = sphi 0, %s109
      %s126 = sphi 0, %s110
    $region4: #{flux_embedding.1} parent=1 // loop_header_branch
      %21 = sbr.rel (%p19) target = $region8
    $region5: #{flux_embedding.1} parent=1 // loop_body
      %s23 = ssub.s32 %s18, 1
      %s24 = ssub.s32 %s18, 2
      %s25 = sadd.s32 %s18, 1
      %s26 = ssub.s32 %s18, %s25
      %p27 = scmp.eq.s32.totalorder %s26, 0
      %s29 = sadd.s32 %s28, 1
      %s30 = scalar_select %p27, %s28, %s29
      %p33 = pneg %p27
      %p34 = scmp.eq.s32.totalorder %s18, 1
      %p35 = por %p33, %p34
      %p36 = scmp.ne.s32.totalorder %s28, %s31
      %p37 = scmp.eq.s32.totalorder %s18, 0
      %p38 = por %p36, %p37
      %p39 = scmp.ne.s32.totalorder %s28, %s31
      %p40 = scmp.eq.s32.totalorder %s23, 1
      %p41 = por %p39, %p40
      %p42 = scmp.ne.s32.totalorder %s31, %s32
      %p43 = scmp.eq.s32.totalorder %s23, 0
      %p44 = por %p42, %p43
      %p45 = scmp.ne.s32.totalorder %s31, %s32
      %p46 = scmp.eq.s32.totalorder %s24, 1
      %p47 = por %p45, %p46
      %p49 = scmp.ne.s32.totalorder %s32, %s48
      %p50 = scmp.eq.s32.totalorder %s24, 0
      %p51 = por %p49, %p50
      %s52 = ssub.s32 %s18, %s25
      %p53 = scmp.eq.s32.totalorder %s52, 0
      %s55 = sadd.s32 %s54, 1
      %s56 = scalar_select %p53, %s54, %s55
      %p59 = pneg %p53
      %p60 = scmp.eq.s32.totalorder %s18, 1
      %p61 = por %p59, %p60
      %p62 = scmp.ne.s32.totalorder %s54, %s57
      %p63 = scmp.eq.s32.totalorder %s18, 0
      %p64 = por %p62, %p63
      %p65 = scmp.ne.s32.totalorder %s54, %s57
      %p66 = scmp.eq.s32.totalorder %s23, 1
      %p67 = por %p65, %p66
      %p68 = scmp.ne.s32.totalorder %s57, %s58
      %p69 = scmp.eq.s32.totalorder %s23, 0
      %p70 = por %p68, %p69
      %p71 = scmp.ne.s32.totalorder %s57, %s58
      %p72 = scmp.eq.s32.totalorder %s24, 1
      %p73 = por %p71, %p72
      %p75 = scmp.ne.s32.totalorder %s58, %s74
      %p76 = scmp.eq.s32.totalorder %s24, 0
      %p77 = por %p75, %p76
      %s78 = ssub.s32 %s18, %s25
      %p79 = scmp.eq.s32.totalorder %s78, 0
      %s81 = sadd.s32 %s80, 1
      %s82 = scalar_select %p79, %s80, %s81
      %p85 = pneg %p79
      %p86 = scmp.eq.s32.totalorder %s18, 1
      %p87 = por %p85, %p86
      %p88 = scmp.ne.s32.totalorder %s80, %s83
      %p89 = scmp.eq.s32.totalorder %s18, 0
      %p90 = por %p88, %p89
      %p91 = scmp.ne.s32.totalorder %s80, %s83
      %p92 = scmp.eq.s32.totalorder %s23, 1
      %p93 = por %p91, %p92
      %p94 = scmp.ne.s32.totalorder %s83, %s84
      %p95 = scmp.eq.s32.totalorder %s23, 0
      %p96 = por %p94, %p95
      %p97 = scmp.ne.s32.totalorder %s83, %s84
      %p98 = scmp.eq.s32.totalorder %s24, 1
      %p99 = por %p97, %p98
      %p101 = scmp.ne.s32.totalorder %s84, %s100
      %p102 = scmp.eq.s32.totalorder %s24, 0
      %p103 = por %p101, %p102
      %s104 = ssub.s32 %s18, %s25
      %p105 = scmp.eq.s32.totalorder %s104, 0
      %s107 = sadd.s32 %s106, 1
      %s108 = scalar_select %p105, %s106, %s107
      %p111 = pneg %p105
      %p112 = scmp.eq.s32.totalorder %s18, 1
      %p113 = por %p111, %p112
      %p114 = scmp.ne.s32.totalorder %s106, %s109
      %p115 = scmp.eq.s32.totalorder %s18, 0
      %p116 = por %p114, %p115
      %p117 = scmp.ne.s32.totalorder %s106, %s109
      %p118 = scmp.eq.s32.totalorder %s23, 1
      %p119 = por %p117, %p118
      %p120 = scmp.ne.s32.totalorder %s109, %s110
      %p121 = scmp.eq.s32.totalorder %s23, 0
      %p122 = por %p120, %p121
      %p123 = scmp.ne.s32.totalorder %s109, %s110
      %p124 = scmp.eq.s32.totalorder %s24, 1
      %p125 = por %p123, %p124
      %p127 = scmp.ne.s32.totalorder %s110, %s126
      %p128 = scmp.eq.s32.totalorder %s24, 0
      %p129 = por %p127, %p128
      %p130 = scmp.le.s32.totalorder 1, %s18
      %p131 = scmp.lt.s32.totalorder %s18, 3
      %p132 = pnand %p130, %p131
      %p133 = pneg %p132
      // Predicated region
      $region9: #{flux_embedding.1} parent=5 // pred_check
        _
      $region10: #{flux_embedding.1} parent=5 // pred_check_branch
        %135 = sbr.rel (%p132) target = $region12
      $region11: #{flux_embedding.1} parent=5 // pred_region
        %s136 = ssub.s32 %s18, 1
      $region12: #{flux_embedding.1} parent=5 // pred_fallthru
        _
      %p137 = scmp.lt.s32.totalorder %s18, 2
      // Predicated region
      $region13: #{flux_embedding.1} parent=5 // pred_check
        %p138 = pneg %p137
      $region14: #{flux_embedding.1} parent=5 // pred_check_branch
        %140 = sbr.rel (%p138) target = $region16
      $region15: #{flux_embedding.1} parent=5 // pred_region
        // Predicated region
        $region17: #{flux_embedding.1} parent=15 // pred_check
          %p141 = pneg %p38
        $region18: #{flux_embedding.1} parent=15 // pred_check_branch
          %143 = sbr.rel (%p141) target = $region20
        $region19: #{flux_embedding.1} parent=15 // pred_region
          %s144 = sand.u32 %s28, 1
          %s145 = scalar_lea.sflag [#allocation3], %s144
          %s146 = sand.u32 %s28, 1
          %s147 = smul.addr %s146, 8
          %s148 = scalar_lea.vmem [#allocation2], %s147
          %s150 = ssub.s32 128, 128
          %151 = vsyncadd %s145, %s150
          %s152 = smul.addr %s18, 128
          %s153 = scalar_lea.hbm %s0, %s152
          %s155 = sshll.u32 %s148, 4
          %s156 = int_to_ptr.vmem [resolvable:$true] %s155
          %158 = dma.hbm_to_vmem [thread:$0]  %s153, 128, %s156, %s145
        $region20: #{flux_embedding.1} parent=15 // pred_fallthru
          _
        // Predicated region
        $region21: #{flux_embedding.1} parent=15 // pred_check
          %p159 = pneg %p64
        $region22: #{flux_embedding.1} parent=15 // pred_check_branch
          %161 = sbr.rel (%p159) target = $region24
        $region23: #{flux_embedding.1} parent=15 // pred_region
          %s162 = sand.u32 %s18, 1
          %s163 = scalar_lea.sflag [#allocation6], %s162
          %s164 = sand.u32 %s54, 1
          %s165 = smul.addr %s164, 8
          %s166 = scalar_lea.vmem [#allocation5], %s165
          %s168 = ssub.s32 128, 128
          %169 = vsyncadd %s163, %s168
          %s170 = smul.addr %s18, 128
          %s171 = scalar_lea.hbm %s1, %s170
          %s173 = sshll.u32 %s166, 4
          %s174 = int_to_ptr.vmem [resolvable:$true] %s173
          %176 = dma.hbm_to_vmem [thread:$0]  %s171, 128, %s174, %s163
        $region24: #{flux_embedding.1} parent=15 // pred_fallthru
          _
        // Predicated region
        $region25: #{flux_embedding.1} parent=15 // pred_check
          %p177 = pneg %p90
        $region26: #{flux_embedding.1} parent=15 // pred_check_branch
          %179 = sbr.rel (%p177) target = $region28
        $region27: #{flux_embedding.1} parent=15 // pred_region
          %s180 = sand.u32 %s18, 1
          %s181 = scalar_lea.sflag [#allocation6], %s180
          %s182 = sand.u32 %s80, 1
          %s183 = smul.addr %s182, 8
          %s184 = scalar_lea.vmem [#allocation7], %s183
          %s186 = ssub.s32 128, 128
          %187 = vsyncadd %s181, %s186
          %s188 = smul.addr %s18, 128
          %s189 = scalar_lea.hbm %s2, %s188
          %s191 = sshll.u32 %s184, 4
          %s192 = int_to_ptr.vmem [resolvable:$true] %s191
          %194 = dma.hbm_to_vmem [thread:$0]  %s189, 128, %s192, %s181
        $region28: #{flux_embedding.1} parent=15 // pred_fallthru
          _
      $region16: #{flux_embedding.1} parent=5 // pred_fallthru
        _
      %p195 = scmp.le.s32.totalorder 1, %s18
      %p196 = scmp.lt.s32.totalorder %s18, 3
      %p197 = pnand %p195, %p196
      %p198 = pneg %p197
      // Predicated region
      $region29: #{flux_embedding.1} parent=5 // pred_check
        _
      $region30: #{flux_embedding.1} parent=5 // pred_check_branch
        %200 = sbr.rel (%p197) target = $region32
      $region31: #{flux_embedding.1} parent=5 // pred_region
        %s201 = ssub.s32 %s18, 1
        %s202 = sand.u32 %s31, 1
        %s203 = scalar_lea.sflag [#allocation3], %s202
        %s204 = sand.u32 %s31, 1
        %s205 = smul.addr %s204, 8
        %s206 = scalar_lea.vmem [#allocation2], %s205
        // Predicated region
        $region33: #{flux_embedding.1} parent=31 // pred_check
          %p207 = pneg %p44
        $region34: #{flux_embedding.1} parent=31 // pred_check_branch
          %209 = sbr.rel (%p207) target = $region36
        $region35: #{flux_embedding.1} parent=31 // pred_region
          %210 = dma.done %s203, 128
        $region36: #{flux_embedding.1} parent=31 // pred_fallthru
          _
        %s211 = sand.u32 %s23, 1
        %s212 = scalar_lea.sflag [#allocation6], %s211
        %s213 = sand.u32 %s57, 1
        %s214 = smul.addr %s213, 8
        %s215 = scalar_lea.vmem [#allocation5], %s214
        // Predicated region
        $region37: #{flux_embedding.1} parent=31 // pred_check
          %p216 = pneg %p70
        $region38: #{flux_embedding.1} parent=31 // pred_check_branch
          %218 = sbr.rel (%p216) target = $region40
        $region39: #{flux_embedding.1} parent=31 // pred_region
          %219 = dma.done %s212, 128
        $region40: #{flux_embedding.1} parent=31 // pred_fallthru
          _
        %s220 = sand.u32 %s23, 1
        %s221 = scalar_lea.sflag [#allocation6], %s220
        %s222 = sand.u32 %s83, 1
        %s223 = smul.addr %s222, 8
        %s224 = scalar_lea.vmem [#allocation7], %s223
        // Predicated region
        $region41: #{flux_embedding.1} parent=31 // pred_check
          %p225 = pneg %p96
        $region42: #{flux_embedding.1} parent=31 // pred_check_branch
          %227 = sbr.rel (%p225) target = $region44
        $region43: #{flux_embedding.1} parent=31 // pred_region
          %228 = dma.done %s221, 128
        $region44: #{flux_embedding.1} parent=31 // pred_fallthru
          _
        %s229 = sand.u32 %s31, 1
        %s230 = scalar_lea.sflag [#allocation3], %s229
        %s231 = sand.u32 %s31, 1
        %s232 = smul.addr %s231, 8
        %s233 = scalar_lea.vmem [#allocation2], %s232
        %p234 = pneg %p44
        %p235 = pneg %p41
        %s236 = sand.u32 %s23, 1
        %s237 = scalar_lea.sflag [#allocation6], %s236
        %s238 = sand.u32 %s57, 1
        %s239 = smul.addr %s238, 8
        %s240 = scalar_lea.vmem [#allocation5], %s239
        %p241 = pneg %p70
        %p242 = pneg %p67
        %s243 = sand.u32 %s23, 1
        %s244 = scalar_lea.sflag [#allocation6], %s243
        %s245 = sand.u32 %s83, 1
        %s246 = smul.addr %s245, 8
        %s247 = scalar_lea.vmem [#allocation7], %s246
        %p248 = pneg %p96
        %p249 = pneg %p93
        %p250 = pneg %p122
        %p251 = pneg %p119
        %s252 = sand.u32 %s109, 1
        %s253 = scalar_lea.sflag [#allocation4], %s252
        %s254 = sand.u32 %s109, 1
        %s255 = smul.addr %s254, 256
        %s256 = scalar_lea.vmem [#allocation8], %s255
        %s257 = smul.u32 8, %s23
        %v258 = vld [vmem:[%s206] sm:$0xff]
        %v259 = vlaneseq
        %v260 = vshrl.u32 %v259, 7
        %v261 = vsub.s32 0, %v260
        %v262 = vrot.slane %v258, %v261
        %264 = vbcast.lane.b32.xlu0 %v262, 256
        %v265 = vpop.permute.xlu0 %264
        %s267 = sor.u32 256, 8
        %268 = vbcast.lane.b32.xlu0 %v262, %s267
        %v269 = vpop.permute.xlu0 %268
        %s271 = sor.u32 256, 16
        %272 = vbcast.lane.b32.xlu0 %v262, %s271
        %v273 = vpop.permute.xlu0 %272
        %s275 = sor.u32 256, 24
        %276 = vbcast.lane.b32.xlu0 %v262, %s275
        %v277 = vpop.permute.xlu0 %276
        %v278 = vlaneseq
        %v279 = vshrl.u32 %v278, 7
        %v280 = vsub.s32 1, %v279
        %v281 = vrot.slane %v258, %v280
        %283 = vbcast.lane.b32.xlu0 %v281, 256
        %v284 = vpop.permute.xlu0 %283
        %s286 = sor.u32 256, 8
        %287 = vbcast.lane.b32.xlu0 %v281, %s286
        %v288 = vpop.permute.xlu0 %287
        %s290 = sor.u32 256, 16
        %291 = vbcast.lane.b32.xlu0 %v281, %s290
        %v292 = vpop.permute.xlu0 %291
        %s294 = sor.u32 256, 24
        %295 = vbcast.lane.b32.xlu0 %v281, %s294
        %v296 = vpop.permute.xlu0 %295
        %v297 = vlaneseq
        %v298 = vshrl.u32 %v297, 7
        %v299 = vsub.s32 2, %v298
        %v300 = vrot.slane %v258, %v299
        %302 = vbcast.lane.b32.xlu0 %v300, 256
        %v303 = vpop.permute.xlu0 %302
        %s305 = sor.u32 256, 8
        %306 = vbcast.lane.b32.xlu0 %v300, %s305
        %v307 = vpop.permute.xlu0 %306
        %s309 = sor.u32 256, 16
        %310 = vbcast.lane.b32.xlu0 %v300, %s309
        %v311 = vpop.permute.xlu0 %310
        %s313 = sor.u32 256, 24
        %314 = vbcast.lane.b32.xlu0 %v300, %s313
        %v315 = vpop.permute.xlu0 %314
        %v316 = vlaneseq
        %v317 = vshrl.u32 %v316, 7
        %v318 = vsub.s32 3, %v317
        %v319 = vrot.slane %v258, %v318
        %321 = vbcast.lane.b32.xlu0 %v319, 256
        %v322 = vpop.permute.xlu0 %321
        %s324 = sor.u32 256, 8
        %325 = vbcast.lane.b32.xlu0 %v319, %s324
        %v326 = vpop.permute.xlu0 %325
        %s328 = sor.u32 256, 16
        %329 = vbcast.lane.b32.xlu0 %v319, %s328
        %v330 = vpop.permute.xlu0 %329
        %s332 = sor.u32 256, 24
        %333 = vbcast.lane.b32.xlu0 %v319, %s332
        %v334 = vpop.permute.xlu0 %333
        %v335 = vlaneseq
        %v336 = vshrl.u32 %v335, 7
        %v337 = vsub.s32 4, %v336
        %v338 = vrot.slane %v258, %v337
        %340 = vbcast.lane.b32.xlu0 %v338, 256
        %v341 = vpop.permute.xlu0 %340
        %s343 = sor.u32 256, 8
        %344 = vbcast.lane.b32.xlu0 %v338, %s343
        %v345 = vpop.permute.xlu0 %344
        %s347 = sor.u32 256, 16
        %348 = vbcast.lane.b32.xlu0 %v338, %s347
        %v349 = vpop.permute.xlu0 %348
        %s351 = sor.u32 256, 24
        %352 = vbcast.lane.b32.xlu0 %v338, %s351
        %v353 = vpop.permute.xlu0 %352
        %v354 = vlaneseq
        %v355 = vshrl.u32 %v354, 7
        %v356 = vsub.s32 5, %v355
        %v357 = vrot.slane %v258, %v356
        %359 = vbcast.lane.b32.xlu0 %v357, 256
        %v360 = vpop.permute.xlu0 %359
        %s362 = sor.u32 256, 8
        %363 = vbcast.lane.b32.xlu0 %v357, %s362
        %v364 = vpop.permute.xlu0 %363
        %s366 = sor.u32 256, 16
        %367 = vbcast.lane.b32.xlu0 %v357, %s366
        %v368 = vpop.permute.xlu0 %367
        %s370 = sor.u32 256, 24
        %371 = vbcast.lane.b32.xlu0 %v357, %s370
        %v372 = vpop.permute.xlu0 %371
        %v373 = vlaneseq
        %v374 = vshrl.u32 %v373, 7
        %v375 = vsub.s32 6, %v374
        %v376 = vrot.slane %v258, %v375
        %378 = vbcast.lane.b32.xlu0 %v376, 256
        %v379 = vpop.permute.xlu0 %378
        %s381 = sor.u32 256, 8
        %382 = vbcast.lane.b32.xlu0 %v376, %s381
        %v383 = vpop.permute.xlu0 %382
        %s385 = sor.u32 256, 16
        %386 = vbcast.lane.b32.xlu0 %v376, %s385
        %v387 = vpop.permute.xlu0 %386
        %s389 = sor.u32 256, 24
        %390 = vbcast.lane.b32.xlu0 %v376, %s389
        %v391 = vpop.permute.xlu0 %390
        %v392 = vlaneseq
        %v393 = vshrl.u32 %v392, 7
        %v394 = vsub.s32 7, %v393
        %v395 = vrot.slane %v258, %v394
        %397 = vbcast.lane.b32.xlu0 %v395, 256
        %v398 = vpop.permute.xlu0 %397
        %s400 = sor.u32 256, 8
        %401 = vbcast.lane.b32.xlu0 %v395, %s400
        %v402 = vpop.permute.xlu0 %401
        %s404 = sor.u32 256, 16
        %405 = vbcast.lane.b32.xlu0 %v395, %s404
        %v406 = vpop.permute.xlu0 %405
        %s408 = sor.u32 256, 24
        %409 = vbcast.lane.b32.xlu0 %v395, %s408
        %v410 = vpop.permute.xlu0 %409
        %v411 = vld [vmem:[%s215] sm:$0xff]
        %v413 = vcombine.high %v411, %v411
        %v415 = vunpack.c.l.s4 1966171168
        %v416 = vunpack.c.0.s8 %v415
        %v417 = vlaneseq
        %v418 = vshrl.u32 %v417, 7
        %v419 = vsub.s32 %v416, %v418
        %v420 = vrot.slane %v411, %v419
        %v422 = vunpack.c.l.s4 1966171168
        %v423 = vunpack.c.0.s8 %v422
        %v424 = vlaneseq
        %v425 = vshrl.u32 %v424, 7
        %v426 = vsub.s32 %v423, %v425
        %v427 = vrot.slane %v413, %v426
        %v428 = vcombine.high %v420, %v420
        %v429 = vcombine.high %v427, %v427
        %v431 = vunpack.c.l.s4 1966171168
        %v432 = vunpack.c.0.s8 %v431
        %v433 = vlaneseq
        %v434 = vshrl.u32 %v433, 7
        %v435 = vsub.s32 %v432, %v434
        %v436 = vrot.slane %v420, %v435
        %v438 = vunpack.c.l.s4 1966171168
        %v439 = vunpack.c.0.s8 %v438
        %v440 = vlaneseq
        %v441 = vshrl.u32 %v440, 7
        %v442 = vsub.s32 %v439, %v441
        %v443 = vrot.slane %v427, %v442
        %v445 = vunpack.c.l.s4 1966171168
        %v446 = vunpack.c.0.s8 %v445
        %v447 = vlaneseq
        %v448 = vshrl.u32 %v447, 7
        %v449 = vsub.s32 %v446, %v448
        %v450 = vrot.slane %v428, %v449
        %v452 = vunpack.c.l.s4 1966171168
        %v453 = vunpack.c.0.s8 %v452
        %v454 = vlaneseq
        %v455 = vshrl.u32 %v454, 7
        %v456 = vsub.s32 %v453, %v455
        %v457 = vrot.slane %v429, %v456
        %v458 = vcombine.high %v436, %v436
        %v459 = vcombine.high %v443, %v443
        %v460 = vcombine.high %v450, %v450
        %v461 = vcombine.high %v457, %v457
        %v462 = vld [vmem:[%s224] sm:$0xff]
        %v464 = vcombine.high %v462, %v462
        %v466 = vunpack.c.l.s4 1966171168
        %v467 = vunpack.c.0.s8 %v466
        %v468 = vlaneseq
        %v469 = vshrl.u32 %v468, 7
        %v470 = vsub.s32 %v467, %v469
        %v471 = vrot.slane %v462, %v470
        %v473 = vunpack.c.l.s4 1966171168
        %v474 = vunpack.c.0.s8 %v473
        %v475 = vlaneseq
        %v476 = vshrl.u32 %v475, 7
        %v477 = vsub.s32 %v474, %v476
        %v478 = vrot.slane %v464, %v477
        %v479 = vcombine.high %v471, %v471
        %v480 = vcombine.high %v478, %v478
        %v482 = vunpack.c.l.s4 1966171168
        %v483 = vunpack.c.0.s8 %v482
        %v484 = vlaneseq
        %v485 = vshrl.u32 %v484, 7
        %v486 = vsub.s32 %v483, %v485
        %v487 = vrot.slane %v471, %v486
        %v489 = vunpack.c.l.s4 1966171168
        %v490 = vunpack.c.0.s8 %v489
        %v491 = vlaneseq
        %v492 = vshrl.u32 %v491, 7
        %v493 = vsub.s32 %v490, %v492
        %v494 = vrot.slane %v478, %v493
        %v496 = vunpack.c.l.s4 1966171168
        %v497 = vunpack.c.0.s8 %v496
        %v498 = vlaneseq
        %v499 = vshrl.u32 %v498, 7
        %v500 = vsub.s32 %v497, %v499
        %v501 = vrot.slane %v479, %v500
        %v503 = vunpack.c.l.s4 1966171168
        %v504 = vunpack.c.0.s8 %v503
        %v505 = vlaneseq
        %v506 = vshrl.u32 %v505, 7
        %v507 = vsub.s32 %v504, %v506
        %v508 = vrot.slane %v480, %v507
        %v509 = vcombine.high %v487, %v487
        %v510 = vcombine.high %v494, %v494
        %v511 = vcombine.high %v501, %v501
        %v512 = vcombine.high %v508, %v508
        %v513 = vlaneseq
        %v514 = vshrl.u32 %v513, 7
        %v515 = vsub.s32 0, %v514
        %v516 = vrot.slane %v436, %v515
        %v517 = vlaneseq
        %v518 = vshrl.u32 %v517, 7
        %v519 = vsub.s32 0, %v518
        %v520 = vrot.slane %v450, %v519
        %v521 = vlaneseq
        %v522 = vshrl.u32 %v521, 7
        %v523 = vsub.s32 0, %v522
        %v524 = vrot.slane %v458, %v523
        %v525 = vlaneseq
        %v526 = vshrl.u32 %v525, 7
        %v527 = vsub.s32 0, %v526
        %v528 = vrot.slane %v460, %v527
        %v529 = vlaneseq
        %v530 = vshrl.u32 %v529, 7
        %v531 = vsub.s32 0, %v530
        %v532 = vrot.slane %v443, %v531
        %v533 = vlaneseq
        %v534 = vshrl.u32 %v533, 7
        %v535 = vsub.s32 0, %v534
        %v536 = vrot.slane %v457, %v535
        %v537 = vlaneseq
        %v538 = vshrl.u32 %v537, 7
        %v539 = vsub.s32 0, %v538
        %v540 = vrot.slane %v459, %v539
        %v541 = vlaneseq
        %v542 = vshrl.u32 %v541, 7
        %v543 = vsub.s32 0, %v542
        %v544 = vrot.slane %v461, %v543
        %v553 = vmul.f32 %v265, %v516
        %v554 = vmul.f32 %v269, %v516
        %v555 = vmul.f32 %v273, %v516
        %v556 = vmul.f32 %v277, %v516
        %v557 = vmul.f32 %v284, %v520
        %v558 = vmul.f32 %v288, %v520
        %v559 = vmul.f32 %v292, %v520
        %v560 = vmul.f32 %v296, %v520
        %v561 = vmul.f32 %v303, %v524
        %v562 = vmul.f32 %v307, %v524
        %v563 = vmul.f32 %v311, %v524
        %v564 = vmul.f32 %v315, %v524
        %v565 = vmul.f32 %v322, %v528
        %v566 = vmul.f32 %v326, %v528
        %v567 = vmul.f32 %v330, %v528
        %v568 = vmul.f32 %v334, %v528
        %v569 = vmul.f32 %v341, %v532
        %v570 = vmul.f32 %v345, %v532
        %v571 = vmul.f32 %v349, %v532
        %v572 = vmul.f32 %v353, %v532
        %v573 = vmul.f32 %v360, %v536
        %v574 = vmul.f32 %v364, %v536
        %v575 = vmul.f32 %v368, %v536
        %v576 = vmul.f32 %v372, %v536
        %v577 = vmul.f32 %v379, %v540
        %v578 = vmul.f32 %v383, %v540
        %v579 = vmul.f32 %v387, %v540
        %v580 = vmul.f32 %v391, %v540
        %v581 = vmul.f32 %v398, %v544
        %v582 = vmul.f32 %v402, %v544
        %v583 = vmul.f32 %v406, %v544
        %v584 = vmul.f32 %v410, %v544
        %v585 = vlaneseq
        %v586 = vshrl.u32 %v585, 7
        %v587 = vsub.s32 0, %v586
        %v588 = vrot.slane %v487, %v587
        %v589 = vlaneseq
        %v590 = vshrl.u32 %v589, 7
        %v591 = vsub.s32 0, %v590
        %v592 = vrot.slane %v501, %v591
        %v593 = vlaneseq
        %v594 = vshrl.u32 %v593, 7
        %v595 = vsub.s32 0, %v594
        %v596 = vrot.slane %v509, %v595
        %v597 = vlaneseq
        %v598 = vshrl.u32 %v597, 7
        %v599 = vsub.s32 0, %v598
        %v600 = vrot.slane %v511, %v599
        %v601 = vlaneseq
        %v602 = vshrl.u32 %v601, 7
        %v603 = vsub.s32 0, %v602
        %v604 = vrot.slane %v494, %v603
        %v605 = vlaneseq
        %v606 = vshrl.u32 %v605, 7
        %v607 = vsub.s32 0, %v606
        %v608 = vrot.slane %v508, %v607
        %v609 = vlaneseq
        %v610 = vshrl.u32 %v609, 7
        %v611 = vsub.s32 0, %v610
        %v612 = vrot.slane %v510, %v611
        %v613 = vlaneseq
        %v614 = vshrl.u32 %v613, 7
        %v615 = vsub.s32 0, %v614
        %v616 = vrot.slane %v512, %v615
        %v625 = vadd.f32 %v553, %v588
        %v626 = vadd.f32 %v554, %v588
        %v627 = vadd.f32 %v555, %v588
        %v628 = vadd.f32 %v556, %v588
        %v629 = vadd.f32 %v557, %v592
        %v630 = vadd.f32 %v558, %v592
        %v631 = vadd.f32 %v559, %v592
        %v632 = vadd.f32 %v560, %v592
        %v633 = vadd.f32 %v561, %v596
        %v634 = vadd.f32 %v562, %v596
        %v635 = vadd.f32 %v563, %v596
        %v636 = vadd.f32 %v564, %v596
        %v637 = vadd.f32 %v565, %v600
        %v638 = vadd.f32 %v566, %v600
        %v639 = vadd.f32 %v567, %v600
        %v640 = vadd.f32 %v568, %v600
        %v641 = vadd.f32 %v569, %v604
        %v642 = vadd.f32 %v570, %v604
        %v643 = vadd.f32 %v571, %v604
        %v644 = vadd.f32 %v572, %v604
        %v645 = vadd.f32 %v573, %v608
        %v646 = vadd.f32 %v574, %v608
        %v647 = vadd.f32 %v575, %v608
        %v648 = vadd.f32 %v576, %v608
        %v649 = vadd.f32 %v577, %v612
        %v650 = vadd.f32 %v578, %v612
        %v651 = vadd.f32 %v579, %v612
        %v652 = vadd.f32 %v580, %v612
        %v653 = vadd.f32 %v581, %v616
        %v654 = vadd.f32 %v582, %v616
        %v655 = vadd.f32 %v583, %v616
        %v656 = vadd.f32 %v584, %v616
        %657 = vst [vmem:[%s256] sm:$0xff] %v625
        %658 = vst [vmem:[%s256 + $0x8] sm:$0xff] %v626
        %659 = vst [vmem:[%s256 + $0x10] sm:$0xff] %v627
        %660 = vst [vmem:[%s256 + $0x18] sm:$0xff] %v628
        %661 = vst [vmem:[%s256 + $0x20] sm:$0xff] %v629
        %662 = vst [vmem:[%s256 + $0x28] sm:$0xff] %v630
        %663 = vst [vmem:[%s256 + $0x30] sm:$0xff] %v631
        %664 = vst [vmem:[%s256 + $0x38] sm:$0xff] %v632
        %665 = vst [vmem:[%s256 + $0x40] sm:$0xff] %v633
        %666 = vst [vmem:[%s256 + $0x48] sm:$0xff] %v634
        %667 = vst [vmem:[%s256 + $0x50] sm:$0xff] %v635
        %668 = vst [vmem:[%s256 + $0x58] sm:$0xff] %v636
        %669 = vst [vmem:[%s256 + $0x60] sm:$0xff] %v637
        %670 = vst [vmem:[%s256 + $0x68] sm:$0xff] %v638
        %671 = vst [vmem:[%s256 + $0x70] sm:$0xff] %v639
        %672 = vst [vmem:[%s256 + $0x78] sm:$0xff] %v640
        %673 = vst [vmem:[%s256 + $0x80] sm:$0xff] %v641
        %674 = vst [vmem:[%s256 + $0x88] sm:$0xff] %v642
        %675 = vst [vmem:[%s256 + $0x90] sm:$0xff] %v643
        %676 = vst [vmem:[%s256 + $0x98] sm:$0xff] %v644
        %677 = vst [vmem:[%s256 + $0xa0] sm:$0xff] %v645
        %678 = vst [vmem:[%s256 + $0xa8] sm:$0xff] %v646
        %679 = vst [vmem:[%s256 + $0xb0] sm:$0xff] %v647
        %680 = vst [vmem:[%s256 + $0xb8] sm:$0xff] %v648
        %681 = vst [vmem:[%s256 + $0xc0] sm:$0xff] %v649
        %682 = vst [vmem:[%s256 + $0xc8] sm:$0xff] %v650
        %683 = vst [vmem:[%s256 + $0xd0] sm:$0xff] %v651
        %684 = vst [vmem:[%s256 + $0xd8] sm:$0xff] %v652
        %685 = vst [vmem:[%s256 + $0xe0] sm:$0xff] %v653
        %686 = vst [vmem:[%s256 + $0xe8] sm:$0xff] %v654
        %687 = vst [vmem:[%s256 + $0xf0] sm:$0xff] %v655
        %688 = vst [vmem:[%s256 + $0xf8] sm:$0xff] %v656
        %s689 = sand.u32 %s109, 1
        %s690 = scalar_lea.sflag [#allocation4], %s689
        %s691 = sand.u32 %s109, 1
        %s692 = smul.addr %s691, 256
        %s693 = scalar_lea.vmem [#allocation8], %s692
        // Predicated region
        $region45: #{flux_embedding.1} parent=31 // pred_check
          %p694 = pneg %p119
        $region46: #{flux_embedding.1} parent=31 // pred_check_branch
          %696 = sbr.rel (%p694) target = $region48
        $region47: #{flux_embedding.1} parent=31 // pred_region
          %s697 = smul.u32 8, %s23
          %s699 = ssub.s32 4096, 4096
          %700 = vsyncadd %s690, %s699
          %s701 = smul.addr %s697, 4
          %s702 = smul.addr %s701, 128
          %s703 = scalar_lea.hbm %s3, %s702
          %s704 = sshll.u32 %s693, 4
          %s705 = int_to_ptr.vmem [resolvable:$true] %s704
          %710 = dma.vmem_to_hbm [thread:$0]  %s705, 4096, %s703, %s690, 128, 128, 8
        $region48: #{flux_embedding.1} parent=31 // pred_fallthru
          _
      $region32: #{flux_embedding.1} parent=5 // pred_fallthru
        _
      %p711 = scmp.le.s32.totalorder 2, %s18
      // Predicated region
      $region49: #{flux_embedding.1} parent=5 // pred_check
        %p712 = pneg %p711
      $region50: #{flux_embedding.1} parent=5 // pred_check_branch
        %714 = sbr.rel (%p712) target = $region52
      $region51: #{flux_embedding.1} parent=5 // pred_region
        %s715 = ssub.s32 %s18, 2
        // Predicated region
        $region53: #{flux_embedding.1} parent=51 // pred_check
          %p716 = pneg %p125
        $region54: #{flux_embedding.1} parent=51 // pred_check_branch
          %718 = sbr.rel (%p716) target = $region56
        $region55: #{flux_embedding.1} parent=51 // pred_region
          %s719 = sand.u32 %s110, 1
          %s720 = scalar_lea.sflag [#allocation4], %s719
          %s721 = sand.u32 %s110, 1
          %s722 = smul.addr %s721, 256
          %s723 = scalar_lea.vmem [#allocation8], %s722
          %724 = dma.done %s720, 4096
        $region56: #{flux_embedding.1} parent=51 // pred_fallthru
          _
      $region52: #{flux_embedding.1} parent=5 // pred_fallthru
        _
    $region6: #{flux_embedding.1} parent=1 // loop_footer
      %s22 = sadd.s32 1, %s18
    $region7: #{flux_embedding.1} parent=1 // loop_footer_branch
      %17 = sbr.rel target = $region3
    $region8: #{flux_embedding.1} parent=1 // loop_exit
      _
    %725 = vsyncpa [#allocation3], 1
    %s726 = scalar_lea.sflag [#allocation3], 1
    %727 = vsyncpa %s726, 1
    %728 = vsyncpa [#allocation6], 1
    %s729 = scalar_lea.sflag [#allocation6], 1
    %730 = vsyncpa %s729, 1
    %731 = vsyncpa [#allocation4], 1
    %s732 = scalar_lea.sflag [#allocation4], 1
    %733 = vsyncpa %s732, 1

</llo_original>
